<compile_context>
chip_gen: v7x
topology: tpu7x:2x2x1
jax: 0.10.0
libtpu: 0.0.40
codegen_flags: <defaults>
</compile_context>

<pallas_src>
import math

import jax
import jax.numpy as jnp
from jax.experimental import pallas as pl
from jax.experimental.pallas import tpu as pltpu

_MIB = 1024 * 1024


# ----------------------------------------------------------------------------
# Per-chip defaults for the BlockSpec-pipelined (VMEM) copy path.
# ----------------------------------------------------------------------------
def _chip_defaults():
    """Return (tile_bytes, vmem_limit_bytes) tuned to the local chip."""
    try:
        vmem_cap = int(pltpu.get_tpu_info().vmem_capacity_bytes)
    except Exception:
        vmem_cap = 128 * _MIB  # conservative assumption (v5e/v6e class)
    if vmem_cap >= 96 * _MIB:
        # v5e / v6e: 128 MiB physical VMEM.  8 MiB tiles -> ~32 MiB working set
        # (in + out, double-buffered); raise the scoped limit (16/32 MiB default).
        return 8 * _MIB, 64 * _MIB
    # v7x: 64 MiB physical VMEM per TensorCore.  6 MiB tiles -> ~24 MiB working
    # set, limit at 40 MiB leaves comfortable headroom.
    return 6 * _MIB, 40 * _MIB


# ----------------------------------------------------------------------------
# Shape helpers.
# ----------------------------------------------------------------------------
def _squeezed_shape(shape, dim):
    ndim = len(shape)
    if ndim == 0:
        return shape  # PyTorch: squeezing a 0-d tensor is a no-op
    d = dim if dim >= 0 else dim + ndim
    if shape[d] == 1:
        return shape[:d] + shape[d + 1:]
    return shape  # PyTorch: squeeze of a non-unit dim is a no-op


def _lane_dense_2d(total):
    """Largest lane width that divides `total` and is a multiple of 128.

    Returns (rows, cols) or None if no multiple-of-128 divisor exists.
    Lane widths are capped at 8192 to keep row tiles reasonable.
    """
    k = min(8192, total) // 128
    for lanes in range(k * 128, 0, -128):
        if total % lanes == 0:
            return total // lanes, lanes
    return None


# ----------------------------------------------------------------------------
# Path 1: chunked HBM -> HBM DMA copy (no VMEM round-trip, no layout rules).
# ----------------------------------------------------------------------------
def _dma_copy(y):
    """Materialize a fresh copy of `y` with up to 4 HBM->HBM DMAs in flight."""
    orig_shape = y.shape
    reshaped = False
    if y.ndim == 0:
        y = y.reshape(1, 1)
        reshaped = True

    leading = y.shape[0]
    total_bytes = y.size * y.dtype.itemsize
    if total_bytes >= 8 * _MIB:
        n_req = 4
    elif total_bytes >= 2 * _MIB:
        n_req = 2
    else:
        n_req = 1
    n = max(1, min(n_req, leading))
    bounds = [(i * leading) // n for i in range(n + 1)]
    chunks = [(bounds[i], bounds[i + 1] - bounds[i])
              for i in range(n) if bounds[i + 1] > bounds[i]]
    n = len(chunks)

    def kernel(x_hbm, o_hbm, sems):
        copies = []
        for idx, (start, size) in enumerate(chunks):
            cp = pltpu.make_async_copy(
                x_hbm.at[pl.ds(start, size)],
                o_hbm.at[pl.ds(start, size)],
                sems.at[idx],
            )
            cp.start()
            copies.append(cp)
        for cp in copies:
            cp.wait()

    out = pl.pallas_call(
        kernel,
        out_shape=jax.ShapeDtypeStruct(y.shape, y.dtype),
        in_specs=[pl.BlockSpec(memory_space=pl.ANY)],
        out_specs=pl.BlockSpec(memory_space=pl.ANY),
        scratch_shapes=[pltpu.SemaphoreType.DMA((n,))],
    )(y)
    return out.reshape(orig_shape) if reshaped else out


# ----------------------------------------------------------------------------
# Path 2: BlockSpec-pipelined, lane-dense VMEM copy.
# ----------------------------------------------------------------------------
def _copy_kernel(x_ref, o_ref):
    # Pure bandwidth kernel: identity materialization of one lane-dense tile.
    o_ref[...] = x_ref[...]


def _vmem_tiled_copy(flat, rows, cols, tile_bytes, vmem_limit_bytes):
    itemsize = flat.dtype.itemsize
    # Sublane packing: one vreg holds 8 f32 rows, 16 bf16 rows, 32 int8 rows.
    sub = max(8, (8 * 4) // itemsize)
    bytes_per_row = max(1, cols * itemsize)
    if rows <= sub:
        tr = rows                                   # full extent: always legal
    else:
        tr = max(1, tile_bytes // bytes_per_row)
        tr = max(sub, (tr // sub) * sub)            # dtype-aware sublane align
        tr = min(tr, rows)                          # edge block is auto-masked
    grid = (pl.cdiv(rows, tr),)
    return pl.pallas_call(
        _copy_kernel,
        out_shape=jax.ShapeDtypeStruct((rows, cols), flat.dtype),
        grid=grid,
        in_specs=[pl.BlockSpec((tr, cols), lambda i: (i, 0))],
        out_specs=pl.BlockSpec((tr, cols), lambda i: (i, 0)),
        compiler_params=pltpu.CompilerParams(
            dimension_semantics=("parallel",),      # megacore sharding
            vmem_limit_bytes=int(vmem_limit_bytes),
        ),
    )(flat)


# ----------------------------------------------------------------------------
# Public wrapper: torch.Tensor.squeeze(dim) equivalent.
# ----------------------------------------------------------------------------
def squeeze_pallas(x: jax.Array, dim: int = -1, *, materialize: bool = False,
                   method: str = "dma", tile_bytes: int | None = None) -> jax.Array:
    """Pallas equivalent of ``x.squeeze(dim)``.

    Default (materialize=False): metadata-only reshape — zero HBM traffic.
    materialize=True: fresh buffer via chunked HBM->HBM DMA (method="dma") or a
    tiled, lane-dense VMEM copy (method="vmem").
    """
    ndim = x.ndim
    lo, hi = ((-1, 0) if ndim == 0 else (-ndim, ndim - 1))
    if not (lo <= dim <= hi):
        raise ValueError(
            f"Dimension out of range (expected to be in [{lo}, {hi}], got {dim})")

    out_shape = _squeezed_shape(x.shape, dim)
    if out_shape == x.shape:
        # PyTorch: squeeze of a non-unit dim aliases the input (no copy, even
        # when materialize=True) — saves a full HBM read+write for the no-op.
        return x

    y = x.reshape(out_shape)  # metadata-only squeeze
    if not materialize:
        return y

    total = math.prod(out_shape) if out_shape else 1
    if total == 0:
        return y

    if method == "vmem":
        ld = _lane_dense_2d(total)
        if ld is not None:
            rows, cols = ld
            tile_default, vmem_limit = _chip_defaults()
            tile = tile_default if tile_bytes is None else tile_bytes
            flat = y.reshape(rows, cols)
            out2d = _vmem_tiled_copy(flat, rows, cols, tile, vmem_limit)
            return out2d.reshape(out_shape)
        # No multiple-of-128 divisor -> masked vst.msk would be ~4.5x slower;
        # fall through to the layout-agnostic DMA path instead.
    return _dma_copy(y)


if __name__ == "__main__":
    key = jax.random.PRNGKey(0)

    # 1) Per-element value-head style output: (B, C, H, 1) -> squeeze(-1).
    x = jax.random.normal(key, (2, 4, 16, 1), dtype=jnp.float32)
    ref = jnp.squeeze(x, axis=-1)

    # Default path: metadata-only (matches PyTorch view semantics, no copy).
    y_view = jax.block_until_ready(squeeze_pallas(x, dim=-1))
    assert y_view.shape == (2, 4, 16) and y_view.dtype == x.dtype
    assert bool(jnp.array_equal(y_view, ref))

    # Materialized path, default chunked HBM->HBM DMA.
    y_dma = jax.block_until_ready(squeeze_pallas(x, dim=-1, materialize=True))
    assert y_dma.shape == (2, 4, 16) and bool(jnp.array_equal(y_dma, ref))

    # Materialized path, lane-dense BlockSpec-pipelined VMEM copy.
    y_vmem = jax.block_until_ready(
        squeeze_pallas(x, dim=-1, materialize=True, method="vmem"))
    assert y_vmem.shape == (2, 4, 16) and bool(jnp.array_equal(y_vmem, ref))

    # 2) Squeeze of a non-unit dim is a no-op (returns x unchanged, no copy).
    x2 = jax.random.normal(key, (2, 4, 16), dtype=jnp.float32)
    y2 = jax.block_until_ready(squeeze_pallas(x2, dim=-1, materialize=True))
    assert y2.shape == x2.shape and bool(jnp.array_equal(y2, x2))

    # 3) Middle-dim squeeze: (2, 1, 16) -> (2, 16).
    x3 = jax.random.normal(key, (2, 1, 16), dtype=jnp.float32)
    y3 = jax.block_until_ready(squeeze_pallas(x3, dim=1, materialize=True))
    assert y3.shape == (2, 16)
    assert bool(jnp.array_equal(y3, jnp.squeeze(x3, axis=1)))

    # 4) Multi-tile pipelined VMEM path (small per-tile budget forces grid > 1).
    x4 = jax.random.normal(key, (64, 16, 128, 1), dtype=jnp.float32)
    y4 = jax.block_until_ready(
        squeeze_pallas(x4, dim=-1, materialize=True, method="vmem",
                       tile_bytes=256 * 1024))
    assert y4.shape == (64, 16, 128)
    assert bool(jnp.array_equal(y4, jnp.squeeze(x4, axis=-1)))

    # 5) bf16: dtype-aware (16-row) sublane-aligned tiles, multi-step grid.
    x5 = jax.random.normal(key, (32, 8, 1024, 1), dtype=jnp.bfloat16)
    y5 = jax.block_until_ready(
        squeeze_pallas(x5, dim=-1, materialize=True, method="vmem",
                       tile_bytes=256 * 1024))
    assert y5.shape == (32, 8, 1024)
    assert bool(jnp.array_equal(y5, jnp.squeeze(x5, axis=-1)))

    # 6) Awkward element count (no multiple-of-128 divisor): the vmem path
    #    routes to the DMA copy instead of masked partial stores.
    x6 = jax.random.normal(key, (3, 7, 5, 1), dtype=jnp.float32)
    y6 = jax.block_until_ready(
        squeeze_pallas(x6, dim=-1, materialize=True, method="vmem"))
    assert y6.shape == (3, 7, 5)
    assert bool(jnp.array_equal(y6, jnp.squeeze(x6, axis=-1)))

    print("KERNEL_OK")
</pallas_src>

<mosaic_0001>
module attributes {stable_mosaic.version = 11 : i64} {
  func.func @kernel(%arg0: memref<2x4x16xf32, #tpu.memory_space<any>>, %arg1: memref<2x4x16xf32, #tpu.memory_space<any>>, %arg2: memref<1x!tpu.dma_semaphore, #tpu.memory_space<semaphore_mem>>) attributes {dimension_semantics = [], scalar_prefetch = 0 : i64, scratch_operands = 1 : i64, tpu.core_type = #tpu.core_type<tc>} {
    %c0_i32 = arith.constant 0 : i32
    %c0_i32_0 = arith.constant 0 : i32
    %c0_i32_1 = arith.constant 0 : i32
    %c0_i32_2 = arith.constant 0 : i32
    %0 = tpu.memref_slice %arg0[%c0_i32_0, %c0_i32_1, %c0_i32_2] : memref<2x4x16xf32, #tpu.memory_space<any>> -> memref<2x4x16xf32, #tpu.memory_space<any>>
    %c0_i32_3 = arith.constant 0 : i32
    %c0_i32_4 = arith.constant 0 : i32
    %c0_i32_5 = arith.constant 0 : i32
    %1 = tpu.memref_slice %arg1[%c0_i32_3, %c0_i32_4, %c0_i32_5] : memref<2x4x16xf32, #tpu.memory_space<any>> -> memref<2x4x16xf32, #tpu.memory_space<any>>
    %2 = tpu.memref_slice %arg2[%c0_i32] : memref<1x!tpu.dma_semaphore, #tpu.memory_space<semaphore_mem>> -> memref<1x!tpu.dma_semaphore, #tpu.memory_space<semaphore_mem>>
    %3 = tpu.memref_squeeze %2 : memref<1x!tpu.dma_semaphore, #tpu.memory_space<semaphore_mem>> -> memref<!tpu.dma_semaphore, #tpu.memory_space<semaphore_mem>>
    tpu.enqueue_dma source(%0 : memref<2x4x16xf32, #tpu.memory_space<any>>) target(%1 : memref<2x4x16xf32, #tpu.memory_space<any>>) target_semaphore(%3 : memref<!tpu.dma_semaphore, #tpu.memory_space<semaphore_mem>>)
    %c0_i32_6 = arith.constant 0 : i32
    %c0_i32_7 = arith.constant 0 : i32
    %c0_i32_8 = arith.constant 0 : i32
    %c0_i32_9 = arith.constant 0 : i32
    %4 = tpu.memref_slice %arg0[%c0_i32_7, %c0_i32_8, %c0_i32_9] : memref<2x4x16xf32, #tpu.memory_space<any>> -> memref<2x4x16xf32, #tpu.memory_space<any>>
    %c0_i32_10 = arith.constant 0 : i32
    %c0_i32_11 = arith.constant 0 : i32
    %c0_i32_12 = arith.constant 0 : i32
    %5 = tpu.memref_slice %arg1[%c0_i32_10, %c0_i32_11, %c0_i32_12] : memref<2x4x16xf32, #tpu.memory_space<any>> -> memref<2x4x16xf32, #tpu.memory_space<any>>
    %6 = tpu.memref_slice %arg2[%c0_i32_6] : memref<1x!tpu.dma_semaphore, #tpu.memory_space<semaphore_mem>> -> memref<1x!tpu.dma_semaphore, #tpu.memory_space<semaphore_mem>>
    %7 = tpu.memref_squeeze %6 : memref<1x!tpu.dma_semaphore, #tpu.memory_space<semaphore_mem>> -> memref<!tpu.dma_semaphore, #tpu.memory_space<semaphore_mem>>
    tpu.wait_dma2 semaphore(%7 : memref<!tpu.dma_semaphore, #tpu.memory_space<semaphore_mem>>) src(%4 : memref<2x4x16xf32, #tpu.memory_space<any>>) dst(%5 : memref<2x4x16xf32, #tpu.memory_space<any>>)
    return
  }
}

</mosaic_0001>

<llo_original>
// kernel: tpu_custom_call.1
$region0: #{tpu_custom_call.1}
  #allocation0 [shape = 'u32[]', space=smem, size = 0x4, offset = 0x4, fixed_abs, tag = 'smem constant byte address 0x4 - core index']
  #allocation1 [shape = 'u32[144,128]{1,0:T(1,128)}', space=vmem, size = 0x12000, scoped, tag = 'internal scratch']
  #allocation2 [shape = 's32[1]{0}', space=sflag, size = 0x4, scoped, tag = 'scratch operand']
  #allocation3 [shape = 's32[]', space=sflag, size = 0x4, offset = 0, fixed_abs, tag = 'sflag constant byte address 0x0 - dummy sync flag']
  #allocation4 [shape = 'u32[0]{0}', space=smem, size = 0, offset = 0, fixed_abs, tag = 'smem constant byte address 0x0 - null']
  %s0 = inlined_call_operand.hbm [shape: f32[2,4,16], index: 0, kind: input, shape index: {}]
  %s1 = inlined_call_operand.hbm [shape: f32[2,4,16], index: 1, kind: output, shape index: {}]
  %s2 = sld [smem:[#allocation0]]
  $region2: #{tpu_custom_call.1} parent=0
    _
  %s4 = ssub.s32 1, %s2
  %s5 = scalar_select 0, %s4, %s2
  %s7 = sshll.u32 1, 14
  %s8 = sxor.u32 4294967295, %s7
  %s11 = sshll.u32 3, 24
  %s12 = sxor.u32 4294967295, %s11
  %s13 = sand.u32 0, %s12
  %s15 = sor.u32 %s13, 0
  %18 = dma.general %s0, 128, %s1, [#allocation2], [#allocation3], [#allocation4], %s15, 0
  %s19 = smul.u32 2, 4
  %s20 = smul.u32 %s19, 1
  %s21 = sshll.u32 %s20, 4
  %22 = dma.done [#allocation2], %s21
  %23 = vsyncmov [#allocation2]
  %s24 = vpop.sfrf %23
  %p25 = scmp.eq.s32.totalorder %s24, 0
  %p26 = pneg %p25
  %28 = shalt.err (%p26)

</llo_original>
